<compile_context>
chip_gen: v7x
topology: tpu7x:2x2x1
jax: 0.10.0
libtpu: 0.0.40
codegen_flags: <defaults>
</compile_context>

<pallas_src>
import functools

import jax
import jax.numpy as jnp
from jax import lax
from jax.experimental import pallas as pl
from jax.experimental.pallas import tpu as pltpu


# ---------------------------------------------------------------------------
# Kernels
# ---------------------------------------------------------------------------
def _pool_sum_kernel(x_ref, o_ref, *, kernel, stride, l_out):
    """Fast VPU path (kernel == stride): shifted strided-sublane loads, no MXU.

    x_ref: (Bt, L, C) block.   o_ref: (Bt, L_out, C) block.
    out[b, o, c] = (1/kernel) * sum_j x[b, o*stride + j, c]
    """
    acc = x_ref[:, pl.ds(0, l_out, stride), :].astype(jnp.float32)
    for j in range(1, kernel):                     # small static unroll
        acc = acc + x_ref[:, pl.ds(j, l_out, stride), :].astype(jnp.float32)
    o_ref[...] = (acc * (1.0 / kernel)).astype(o_ref.dtype)


def _pool_matmul_kernel(x_ref, o_ref, *, kernel, stride, l_out, l_in, bt):
    """General path (overlapping windows): MXU matmul with an in-kernel banded
    pooling matrix.

    P is 0/1 in the input dtype (native MXU mode, e.g. bf16 x bf16 -> f32);
    the 1/kernel scale is applied in f32 AFTER the dot so it stays exact even
    when 1/kernel is not representable in the input dtype.
    """
    rows = lax.broadcasted_iota(jnp.int32, (l_out, l_in), 0)
    cols = lax.broadcasted_iota(jnp.int32, (l_out, l_in), 1)
    start = rows * stride
    p = ((cols >= start) & (cols < start + kernel)).astype(x_ref.dtype)
    inv_k = 1.0 / kernel
    for b in range(bt):                            # bt is kept small (<= 8)
        acc = jnp.dot(p, x_ref[b], preferred_element_type=jnp.float32)
        o_ref[b] = (acc * inv_k).astype(o_ref.dtype)


# ---------------------------------------------------------------------------
# Wrapper
# ---------------------------------------------------------------------------
def _choose_block_batch(batch, bytes_per_batch, *, max_bt, target_bytes=2 << 20):
    """Pick the per-step batch block: ~target_bytes working set per grid step,
    but keep >= 2 grid steps when batch >= 2 so v7x's two TensorCores both get
    work (single-TC v5e/v6e are unaffected)."""
    bt = max(1, min(batch, target_bytes // max(bytes_per_batch, 1)))
    if batch >= 2:
        bt = min(bt, -(-batch // 2))
    return int(min(bt, max_bt))


def avg_pool1d_seq(x, kernel, stride):
    """Equivalent of x.permute(0,2,1) -> nn.AvgPool1d(kernel, stride) -> permute(0,2,1).

    x: (B, L, C).  Returns (B, L_out, C) with L_out = (L - kernel)//stride + 1
    (PyTorch defaults: padding=0, ceil_mode=False).
    """
    kernel = int(kernel)
    stride = int(stride)
    B, L, C = x.shape
    if L < kernel:
        raise ValueError("sequence length shorter than pooling kernel")
    L_out = (L - kernel) // stride + 1
    itemsize = jnp.dtype(x.dtype).itemsize

    per_batch_bytes = (L * C + L_out * C) * itemsize
    use_fast = (kernel == stride)                  # non-overlapping windows

    if use_fast:
        bt = _choose_block_batch(B, per_batch_bytes, max_bt=B)
        kern = functools.partial(_pool_sum_kernel,
                                 kernel=kernel, stride=stride, l_out=L_out)
        extra_bytes = 0
    else:
        bt = _choose_block_batch(B, per_batch_bytes, max_bt=8)
        kern = functools.partial(_pool_matmul_kernel,
                                 kernel=kernel, stride=stride,
                                 l_out=L_out, l_in=L, bt=bt)
        # in-kernel P (input dtype) + int32 iota temporaries
        extra_bytes = L_out * L * (itemsize + 4)

    # Double-buffered in+out blocks, capped below v7x's 64 MiB physical VMEM.
    step_bytes = 2 * bt * per_batch_bytes
    vmem_limit = int(min(64 << 20, max(32 << 20, 2 * step_bytes + 2 * extra_bytes)))

    grid = (pl.cdiv(B, bt),)
    return pl.pallas_call(
        kern,
        grid=grid,
        in_specs=[pl.BlockSpec((bt, L, C), lambda b: (b, 0, 0))],
        out_specs=pl.BlockSpec((bt, L_out, C), lambda b: (b, 0, 0)),
        out_shape=jax.ShapeDtypeStruct((B, L_out, C), x.dtype),
        compiler_params=pltpu.CompilerParams(
            dimension_semantics=("parallel",),
            vmem_limit_bytes=vmem_limit),
    )(x)


# ---------------------------------------------------------------------------
# Pure-JAX reference (matches PyTorch AvgPool1d: padding=0, ceil_mode=False)
# ---------------------------------------------------------------------------
def _ref_pool(x, kernel, stride):
    B, L, C = x.shape
    L_out = (L - kernel) // stride + 1
    idx = jnp.arange(L_out)[:, None] * stride + jnp.arange(kernel)[None, :]
    return x[:, idx, :].mean(axis=2)


if __name__ == "__main__":
    key = jax.random.PRNGKey(0)
    B, L, C = 2, 128, 16
    x = jax.random.normal(key, (B, L, C), dtype=jnp.float32)

    # Model configuration: pool(kernel=2, stride=2) -> VPU shifted-sum fast path.
    out = jax.jit(lambda v: avg_pool1d_seq(v, 2, 2))(x)
    jax.block_until_ready(out)
    assert out.shape == (B, (L - 2) // 2 + 1, C)
    assert bool(jnp.allclose(out, _ref_pool(x, 2, 2), atol=1e-5, rtol=1e-5))

    # Overlapping-window configuration -> general MXU path with in-kernel banded P.
    out2 = jax.jit(lambda v: avg_pool1d_seq(v, 4, 3))(x)
    jax.block_until_ready(out2)
    assert out2.shape == (B, (L - 4) // 3 + 1, C)
    assert bool(jnp.allclose(out2, _ref_pool(x, 4, 3), atol=1e-5, rtol=1e-5))

    print("KERNEL_OK")
</pallas_src>

<mosaic_0001>
module attributes {stable_mosaic.version = 11 : i64} {
  func.func @_pool_sum_kernel(%arg0: i32, %arg1: memref<1x128x16xf32, #tpu.memory_space<vmem>>, %arg2: memref<1x64x16xf32, #tpu.memory_space<vmem>>) attributes {dimension_semantics = [#tpu.dimension_semantics<parallel>], iteration_bounds = array<i64: 2>, scalar_prefetch = 0 : i64, scratch_operands = 0 : i64, tpu.core_type = #tpu.core_type<tc>, window_params = [{transform_indices = @transform_0, window_bounds = array<i64: 1, 128, 16>}, {transform_indices = @transform_1, window_bounds = array<i64: 1, 64, 16>}]} {
    %c0 = arith.constant 0 : index
    %c0_0 = arith.constant 0 : index
    %c0_1 = arith.constant 0 : index
    %0 = tpu.strided_load %arg1[%c0, %c0_0, %c0_1] {strides = array<i32: 1, 2, 1>} : memref<1x128x16xf32, #tpu.memory_space<vmem>>, vector<1x64x16xf32>
    %c0_2 = arith.constant 0 : index
    %c1 = arith.constant 1 : index
    %c0_3 = arith.constant 0 : index
    %1 = tpu.strided_load %arg1[%c0_2, %c1, %c0_3] {strides = array<i32: 1, 2, 1>} : memref<1x128x16xf32, #tpu.memory_space<vmem>>, vector<1x64x16xf32>
    %2 = arith.addf %0, %1 : vector<1x64x16xf32>
    %cst = arith.constant 5.000000e-01 : f32
    %3 = vector.broadcast %cst : f32 to vector<1x64x16xf32>
    %4 = arith.mulf %2, %3 : vector<1x64x16xf32>
    %c0_4 = arith.constant 0 : index
    %c0_5 = arith.constant 0 : index
    %c0_6 = arith.constant 0 : index
    %5 = vector.load %arg2[%c0_4, %c0_5, %c0_6] : memref<1x64x16xf32, #tpu.memory_space<vmem>>, vector<1x64x16xf32>
    tpu.vector_store %arg2[%c0_4, %c0_5, %c0_6], %4 {strides = array<i32>} : memref<1x64x16xf32, #tpu.memory_space<vmem>>, vector<1x64x16xf32>,
    return
  }
  func.func @transform_0(%arg0: i32) -> (i32, i32, i32) {
    %c0_i32 = arith.constant 0 : i32
    %c0_i32_0 = arith.constant 0 : i32
    %c0_i32_1 = arith.constant 0 : i32
    return %arg0, %c0_i32, %c0_i32_0 : i32, i32, i32
  }
  func.func @transform_1(%arg0: i32) -> (i32, i32, i32) {
    %c0_i32 = arith.constant 0 : i32
    %c0_i32_0 = arith.constant 0 : i32
    %c0_i32_1 = arith.constant 0 : i32
    return %arg0, %c0_i32, %c0_i32_0 : i32, i32, i32
  }
}

</mosaic_0001>

<llo_original>
// kernel: _lambda_.1
$region0: #{_lambda_.1}
  #allocation0 [shape = 'u32[]', space=smem, size = 0x4, offset = 0x4, fixed_abs, tag = 'smem constant byte address 0x4 - core index']
  #allocation1 [shape = 'u32[144,128]{1,0:T(1,128)}', space=vmem, size = 0x12000, scoped, tag = 'internal scratch']
  %s0 = inlined_call_operand.vmem [shape: f32[2,128,16], index: 0, kind: input, shape index: {}]
  %s1 = inlined_call_operand.vmem [shape: f32[2,64,16], index: 1, kind: output, shape index: {}]
  %s2 = sld [smem:[#allocation0]]
  $region37: #{_lambda_.1} parent=0
    _
  %s4 = ssub.s32 1, %s2
  %s5 = scalar_select 0, %s4, %s2
  loop: start=0, step=1, limit=4
  $region2: #{_lambda_.1} parent=0 // loop_pre_header
    _
  $region3: #{_lambda_.1} parent=0 // loop_header
    %s7 = sphi 0, %s11
    %p8 = scmp.ge.s32.totalorder %s7, 4
    %s17 = sphi 0, %s19
    %s20 = sphi 0, %s17
    %s21 = sphi 0, %s20
    %s37 = sphi 0, %s21
    %s43 = sphi 0, %s45
    %s46 = sphi 0, %s43
    %s47 = sphi 0, %s46
    %s63 = sphi 0, %s47
  $region4: #{_lambda_.1} parent=0 // loop_header_branch
    %10 = sbr.rel (%p8) target = $region8
  $region5: #{_lambda_.1} parent=0 // loop_body
    %s12 = ssub.s32 %s7, 1
    %s13 = ssub.s32 %s7, 2
    %s14 = sadd.s32 %s7, 1
    %s15 = ssub.s32 %s7, %s14
    %p16 = scmp.eq.s32.totalorder %s15, 0
    %s18 = sadd.s32 %s17, 1
    %s19 = scalar_select %p16, %s17, %s18
    %p22 = pneg %p16
    %p23 = scmp.eq.s32.totalorder %s7, 1
    %p24 = por %p22, %p23
    %p25 = scmp.ne.s32.totalorder %s17, %s20
    %p26 = scmp.eq.s32.totalorder %s7, 0
    %p27 = por %p25, %p26
    %p28 = scmp.ne.s32.totalorder %s17, %s20
    %p29 = scmp.eq.s32.totalorder %s12, 1
    %p30 = por %p28, %p29
    %p31 = scmp.ne.s32.totalorder %s20, %s21
    %p32 = scmp.eq.s32.totalorder %s12, 0
    %p33 = por %p31, %p32
    %p34 = scmp.ne.s32.totalorder %s20, %s21
    %p35 = scmp.eq.s32.totalorder %s13, 1
    %p36 = por %p34, %p35
    %p38 = scmp.ne.s32.totalorder %s21, %s37
    %p39 = scmp.eq.s32.totalorder %s13, 0
    %p40 = por %p38, %p39
    %s41 = ssub.s32 %s7, %s14
    %p42 = scmp.eq.s32.totalorder %s41, 0
    %s44 = sadd.s32 %s43, 1
    %s45 = scalar_select %p42, %s43, %s44
    %p48 = pneg %p42
    %p49 = scmp.eq.s32.totalorder %s7, 1
    %p50 = por %p48, %p49
    %p51 = scmp.ne.s32.totalorder %s43, %s46
    %p52 = scmp.eq.s32.totalorder %s7, 0
    %p53 = por %p51, %p52
    %p54 = scmp.ne.s32.totalorder %s43, %s46
    %p55 = scmp.eq.s32.totalorder %s12, 1
    %p56 = por %p54, %p55
    %p57 = scmp.ne.s32.totalorder %s46, %s47
    %p58 = scmp.eq.s32.totalorder %s12, 0
    %p59 = por %p57, %p58
    %p60 = scmp.ne.s32.totalorder %s46, %s47
    %p61 = scmp.eq.s32.totalorder %s13, 1
    %p62 = por %p60, %p61
    %p64 = scmp.ne.s32.totalorder %s47, %s63
    %p65 = scmp.eq.s32.totalorder %s13, 0
    %p66 = por %p64, %p65
    %p67 = scmp.le.s32.totalorder 1, %s7
    %p68 = scmp.lt.s32.totalorder %s7, 3
    %p69 = pnand %p67, %p68
    %p70 = pneg %p69
    // Predicated region
    $region9: #{_lambda_.1} parent=5 // pred_check
      _
    $region10: #{_lambda_.1} parent=5 // pred_check_branch
      %72 = sbr.rel (%p69) target = $region12
    $region11: #{_lambda_.1} parent=5 // pred_region
      %s73 = ssub.s32 %s7, 1
    $region12: #{_lambda_.1} parent=5 // pred_fallthru
      _
    %p74 = scmp.lt.s32.totalorder %s7, 2
    // Predicated region
    $region13: #{_lambda_.1} parent=5 // pred_check
      %p75 = pneg %p74
    $region14: #{_lambda_.1} parent=5 // pred_check_branch
      %77 = sbr.rel (%p75) target = $region16
    $region15: #{_lambda_.1} parent=5 // pred_region
      // Predicated region
      $region17: #{_lambda_.1} parent=15 // pred_check
        %p78 = pneg %p27
      $region18: #{_lambda_.1} parent=15 // pred_check_branch
        %80 = sbr.rel (%p78) target = $region20
      $region19: #{_lambda_.1} parent=15 // pred_region
        %p81 = scmp.lt.s32.totalorder %s7, 1
        %s82 = scalar_select %p81, %s7, 1
        %s83 = smul.addr %s82, 16
        %s84 = smul.addr %s83, 8
        %s85 = scalar_lea.vmem %s0, %s84
      $region20: #{_lambda_.1} parent=15 // pred_fallthru
        _
    $region16: #{_lambda_.1} parent=5 // pred_fallthru
      _
    %p86 = scmp.le.s32.totalorder 1, %s7
    %p87 = scmp.lt.s32.totalorder %s7, 3
    %p88 = pnand %p86, %p87
    %p89 = pneg %p88
    // Predicated region
    $region21: #{_lambda_.1} parent=5 // pred_check
      _
    $region22: #{_lambda_.1} parent=5 // pred_check_branch
      %91 = sbr.rel (%p88) target = $region24
    $region23: #{_lambda_.1} parent=5 // pred_region
      %s92 = ssub.s32 %s7, 1
      %p93 = scmp.lt.s32.totalorder %s12, 1
      %s94 = scalar_select %p93, %s12, 1
      %s95 = smul.addr %s94, 16
      %s96 = smul.addr %s95, 8
      %s97 = scalar_lea.vmem %s0, %s96
      %p98 = pneg %p33
      %p99 = pneg %p30
      %p100 = pneg %p59
      %p101 = pneg %p56
      %p102 = scmp.lt.s32.totalorder %s12, 1
      %s103 = scalar_select %p102, %s12, 1
      %s104 = smul.addr %s103, 8
      %s105 = smul.addr %s104, 8
      %s106 = scalar_lea.vmem %s1, %s105
      %p107 = scmp.lt.s32.totalorder %s12, 1
      %s108 = scalar_select %p107, %s12, 1
      %s109 = smul.addr %s108, 16
      %s110 = smul.addr %s109, 8
      %s111 = scalar_lea.vmem %s0, %s110
      %p112 = scmp.lt.s32.totalorder %s12, 1
      %s113 = scalar_select %p112, %s12, 1
      %s114 = smul.addr %s113, 8
      %s115 = smul.addr %s114, 8
      %s116 = scalar_lea.vmem %s1, %s115
      %v117 = vld [vmem:[%s111] ss:$2 sm:$0xff]
      %s118 = scalar_lea.vmem %s111, 16
      %v119 = vld [vmem:[%s118] ss:$2 sm:$0xff]
      %s120 = scalar_lea.vmem %s111, 32
      %v121 = vld [vmem:[%s120] ss:$2 sm:$0xff]
      %s122 = scalar_lea.vmem %s111, 48
      %v123 = vld [vmem:[%s122] ss:$2 sm:$0xff]
      %s124 = scalar_lea.vmem %s111, 64
      %v125 = vld [vmem:[%s124] ss:$2 sm:$0xff]
      %s126 = scalar_lea.vmem %s111, 80
      %v127 = vld [vmem:[%s126] ss:$2 sm:$0xff]
      %s128 = scalar_lea.vmem %s111, 96
      %v129 = vld [vmem:[%s128] ss:$2 sm:$0xff]
      %s130 = scalar_lea.vmem %s111, 112
      %v131 = vld [vmem:[%s130] ss:$2 sm:$0xff]
      %s132 = scalar_lea.vmem %s111, 1
      %v133 = vld [vmem:[%s132] ss:$2 sm:$0xff]
      %s134 = scalar_lea.vmem %s111, 17
      %v135 = vld [vmem:[%s134] ss:$2 sm:$0xff]
      %s136 = scalar_lea.vmem %s111, 33
      %v137 = vld [vmem:[%s136] ss:$2 sm:$0xff]
      %s138 = scalar_lea.vmem %s111, 49
      %v139 = vld [vmem:[%s138] ss:$2 sm:$0xff]
      %s140 = scalar_lea.vmem %s111, 65
      %v141 = vld [vmem:[%s140] ss:$2 sm:$0xff]
      %s142 = scalar_lea.vmem %s111, 81
      %v143 = vld [vmem:[%s142] ss:$2 sm:$0xff]
      %s144 = scalar_lea.vmem %s111, 97
      %v145 = vld [vmem:[%s144] ss:$2 sm:$0xff]
      %s146 = scalar_lea.vmem %s111, 113
      %v147 = vld [vmem:[%s146] ss:$2 sm:$0xff]
      %v148 = vadd.f32 %v117, %v133
      %v149 = vadd.f32 %v119, %v135
      %v150 = vadd.f32 %v121, %v137
      %v151 = vadd.f32 %v123, %v139
      %v152 = vadd.f32 %v125, %v141
      %v153 = vadd.f32 %v127, %v143
      %v154 = vadd.f32 %v129, %v145
      %v155 = vadd.f32 %v131, %v147
      %v156 = vmul.f32 %v148, 0.5
      %v157 = vmul.f32 %v149, 0.5
      %v158 = vmul.f32 %v150, 0.5
      %v159 = vmul.f32 %v151, 0.5
      %v160 = vmul.f32 %v152, 0.5
      %v161 = vmul.f32 %v153, 0.5
      %v162 = vmul.f32 %v154, 0.5
      %v163 = vmul.f32 %v155, 0.5
      %vm164 = vcmask 130048
      %165 = vst.msk [vmem:[%s116] sm:$0xff] %vm164, %v156
      %166 = vst.msk [vmem:[%s116 + $0x8] sm:$0xff] %vm164, %v157
      %167 = vst.msk [vmem:[%s116 + $0x10] sm:$0xff] %vm164, %v158
      %168 = vst.msk [vmem:[%s116 + $0x18] sm:$0xff] %vm164, %v159
      %169 = vst.msk [vmem:[%s116 + $0x20] sm:$0xff] %vm164, %v160
      %170 = vst.msk [vmem:[%s116 + $0x28] sm:$0xff] %vm164, %v161
      %171 = vst.msk [vmem:[%s116 + $0x30] sm:$0xff] %vm164, %v162
      %172 = vst.msk [vmem:[%s116 + $0x38] sm:$0xff] %vm164, %v163
      %p173 = scmp.lt.s32.totalorder %s12, 1
      %s174 = scalar_select %p173, %s12, 1
      %s175 = smul.addr %s174, 8
      %s176 = smul.addr %s175, 8
      %s177 = scalar_lea.vmem %s1, %s176
      // Predicated region
      $region25: #{_lambda_.1} parent=23 // pred_check
        %p178 = pneg %p56
      $region26: #{_lambda_.1} parent=23 // pred_check_branch
        %180 = sbr.rel (%p178) target = $region28
      $region27: #{_lambda_.1} parent=23 // pred_region
        _
      $region28: #{_lambda_.1} parent=23 // pred_fallthru
        _
    $region24: #{_lambda_.1} parent=5 // pred_fallthru
      _
    %p181 = scmp.le.s32.totalorder 2, %s7
    // Predicated region
    $region29: #{_lambda_.1} parent=5 // pred_check
      %p182 = pneg %p181
    $region30: #{_lambda_.1} parent=5 // pred_check_branch
      %184 = sbr.rel (%p182) target = $region32
    $region31: #{_lambda_.1} parent=5 // pred_region
      %s185 = ssub.s32 %s7, 2
      // Predicated region
      $region33: #{_lambda_.1} parent=31 // pred_check
        %p186 = pneg %p62
      $region34: #{_lambda_.1} parent=31 // pred_check_branch
        %188 = sbr.rel (%p186) target = $region36
      $region35: #{_lambda_.1} parent=31 // pred_region
        %p189 = scmp.lt.s32.totalorder %s13, 1
        %s190 = scalar_select %p189, %s13, 1
        %s191 = smul.addr %s190, 8
        %s192 = smul.addr %s191, 8
        %s193 = scalar_lea.vmem %s1, %s192
      $region36: #{_lambda_.1} parent=31 // pred_fallthru
        _
    $region32: #{_lambda_.1} parent=5 // pred_fallthru
      _
  $region6: #{_lambda_.1} parent=0 // loop_footer
    %s11 = sadd.s32 1, %s7
  $region7: #{_lambda_.1} parent=0 // loop_footer_branch
    %6 = sbr.rel target = $region3
  $region8: #{_lambda_.1} parent=0 // loop_exit
    _

</llo_original>
